<compile_context>
chip_gen: v5e
topology: v5e:2x2
jax: 0.10.0
libtpu: 0.0.40
codegen_flags: <defaults>
</compile_context>

<pallas_src>
import functools

import jax
import jax.numpy as jnp
from jax.experimental import pallas as pl
from jax.experimental.pallas import tpu as pltpu


# -----------------------------------------------------------------------------
# Stage 1: embedding kernel (word embedding + positional embedding)
# -----------------------------------------------------------------------------
def embed_kernel(x_ref, wwe_ref, bwe_ref, pos_ref, o_ref):
    # x_ref: (Bn, S, V), wwe: (V, E), bwe: (1, E) f32, pos: (S, E) f32
    Bn, S, V = x_ref.shape
    E = wwe_ref.shape[1]
    cdt = wwe_ref.dtype
    x2 = x_ref[...].reshape(Bn * S, V).astype(cdt)
    emb = jnp.dot(x2, wwe_ref[...], preferred_element_type=jnp.float32)  # (Bn*S, E)
    emb = emb.reshape(Bn, S, E) + bwe_ref[...] + pos_ref[...]
    o_ref[...] = emb.astype(o_ref.dtype)


# -----------------------------------------------------------------------------
# Stage 2: fused transformer layers, grid = (batch_block, layer)
# -----------------------------------------------------------------------------
def encoder_layers_kernel(
    emb_ref,                          # (Bn, S, E) embedded input (read at layer 0)
    wq_ref, wk_ref, wv_ref, wo_ref,   # (1, E, E) weight_dtype, pre-transposed, scale in wq
    vecs_ref,                         # (1, 8, E) f32: rows = ln1_g, ln1_b, b2, ln2_g, ln2_b
    w1_ref,                           # (1, E, FE) weight_dtype
    b1_ref,                           # (1, 1, FE) f32
    w2_ref,                           # (1, FE, E) weight_dtype
    o_ref,                            # (Bn, S, E) resident activation / final output
    *, heads, head_dim, eps,
):
    layer = pl.program_id(1)

    # Layer 0: load the embedded activation into the resident output block.
    @pl.when(layer == 0)
    def _init():
        o_ref[...] = emb_ref[...]

    Bn, S, E = o_ref.shape
    M = Bn * S
    cdt = wq_ref.dtype                    # MXU operand dtype (f32 or bf16)

    h = o_ref[...].reshape(M, E).astype(jnp.float32)      # (M, E) f32 activation
    hc = h.astype(cdt)

    # ---- Self attention: full-width projections (M = Bn*S rows) -------------
    q = jnp.dot(hc, wq_ref[0], preferred_element_type=jnp.float32)  # (M, E) f32
    k = jnp.dot(hc, wk_ref[0], preferred_element_type=jnp.float32)
    v = jnp.dot(hc, wv_ref[0], preferred_element_type=jnp.float32)

    # Head-id of every lane: VPU mask instead of lane-dim slicing (head_dim<128).
    col_head = jax.lax.broadcasted_iota(jnp.int32, (1, E), 1) // head_dim
    masks = [(col_head == hh).astype(jnp.float32) for hh in range(heads)]

    kc = k.astype(cdt)
    vc = v.astype(cdt)

    # Attention must stay per batch element (no cross-element mixing), so loop
    # over the Bn elements; all heads of one element share ONE stacked energy
    # matmul and ONE softmax pass.
    attn_rows = []
    for b in range(Bn):                                    # static, unrolled (Bn small)
        r0, r1 = b * S, (b + 1) * S
        qb, kb, vb = q[r0:r1], kc[r0:r1], vc[r0:r1]
        # Stack masked Q of all heads along rows -> (H*S, E).
        qhat = jnp.concatenate([qb * masks[hh] for hh in range(heads)], axis=0)
        energy = jax.lax.dot_general(                      # (H*S, S)
            qhat.astype(cdt), kb, (((1,), (1,)), ((), ())),
            preferred_element_type=jnp.float32)
        energy = energy - jnp.max(energy, axis=-1, keepdims=True)
        p = jnp.exp(energy)
        p = p * pl.reciprocal(jnp.sum(p, axis=-1, keepdims=True), approx=False)
        pv = jnp.dot(p.astype(cdt), vb, preferred_element_type=jnp.float32)  # (H*S, E)
        # Head-h output lands only in head-h lanes; summing over heads == concat.
        ab = pv[0:S] * masks[0]
        for hh in range(1, heads):
            ab = ab + pv[hh * S:(hh + 1) * S] * masks[hh]
        attn_rows.append(ab)
    attn = attn_rows[0] if Bn == 1 else jnp.concatenate(attn_rows, axis=0)   # (M, E)

    attn = jnp.dot(attn.astype(cdt), wo_ref[0], preferred_element_type=jnp.float32)

    # Packed per-layer vectors (f32, kept on the VPU in f32).
    vecs = vecs_ref[0]                                      # (8, E)
    ln1_g, ln1_b = vecs[0:1], vecs[1:2]
    b2, ln2_g, ln2_b = vecs[2:3], vecs[3:4], vecs[4:5]

    def layer_norm(z, g, b):
        mu = jnp.mean(z, axis=-1, keepdims=True)
        var = jnp.mean((z - mu) ** 2, axis=-1, keepdims=True)
        return (z - mu) * jax.lax.rsqrt(var + eps) * g + b

    # residual + LayerNorm 1 (dropout = identity)
    h1 = layer_norm(attn + h, ln1_g, ln1_b)

    # feed-forward (weights pre-transposed: plain x @ W), f32 accumulation
    ff = jnp.dot(h1.astype(cdt), w1_ref[0], preferred_element_type=jnp.float32) + b1_ref[0]
    ff = jnp.maximum(ff, 0.0)
    ff = jnp.dot(ff.astype(cdt), w2_ref[0], preferred_element_type=jnp.float32) + b2

    # residual + LayerNorm 2 (dropout = identity)
    o_ref[...] = layer_norm(ff + h1, ln2_g, ln2_b).reshape(Bn, S, E).astype(o_ref.dtype)


# -----------------------------------------------------------------------------
# Wrapper: weight preprocessing + the two pallas_calls.
# -----------------------------------------------------------------------------
def _fuse_params(params, *, heads, weight_dtype):
    """Stack per-layer weights along a leading layer axis, pre-transposed for
    `x @ W`; per-head (D, D) Q/K/V weights -> block-diagonal (E, E) matrices
    (kron(I_H, W.T)); 1/sqrt(E) folded into Wq; matmul weights cast to
    `weight_dtype`; the five small E-width vectors packed into one array."""
    E = params["w_we"].shape[0]
    eye_h = jnp.eye(heads, dtype=jnp.float32)
    scale = 1.0 / (E ** 0.5)

    def blkdiag_t(w):               # (D, D) torch (out,in) layout -> (E, E) for x @ W
        return jnp.kron(eye_h, w.T)

    def packed_vecs(lp):            # rows: ln1_g, ln1_b, b2, ln2_g, ln2_b, 3x pad
        v = jnp.concatenate(
            [lp["ln1_g"], lp["ln1_b"], lp["b2"], lp["ln2_g"], lp["ln2_b"]], axis=0)
        return jnp.pad(v, ((0, 3), (0, 0)))

    layers = params["layers"]
    st = lambda f, dt=weight_dtype: jnp.stack([f(lp) for lp in layers]).astype(dt)
    return {
        "w_we_t": params["w_we"].T.astype(weight_dtype),        # (V, E)
        "b_we": params["b_we"],                                 # (1, E) f32
        "wq": st(lambda lp: blkdiag_t(lp["wq"]) * scale),       # (L, E, E)
        "wk": st(lambda lp: blkdiag_t(lp["wk"])),               # (L, E, E)
        "wv": st(lambda lp: blkdiag_t(lp["wv"])),               # (L, E, E)
        "wo": st(lambda lp: lp["wo"].T),                        # (L, E, E)
        "vecs": st(packed_vecs, jnp.float32),                   # (L, 8, E) f32
        "w1": st(lambda lp: lp["w1"].T),                        # (L, E, FE)
        "b1": st(lambda lp: lp["b1"], jnp.float32),             # (L, 1, FE) f32
        "w2": st(lambda lp: lp["w2"].T),                        # (L, FE, E)
    }


def _pick_batch_block(N):
    # Keep exactly 2 "parallel" batch blocks when possible: shards across the
    # two TensorCores on v7x while reducing per-layer weight re-streaming to 2x.
    if N >= 2 and N % 2 == 0:
        return N // 2
    return 1


def _vmem_budget(block_bytes):
    # 2x for double buffering, + headroom for f32 intermediates, capped so the
    # request is valid on every generation (v7x physical VMEM = 64 MiB).
    need = 2 * sum(block_bytes) + (8 << 20)
    return int(min(max(need, 16 << 20), 64 << 20))


def encoder_forward(x, params, *, heads, mask=None, eps=1e-5,
                    weight_dtype=jnp.float32):
    """Full Encoder forward: embedding pallas_call + fused layers pallas_call."""
    del mask  # unused by the reference SelfAttention as well
    N, S, V = x.shape
    E = params["w_we"].shape[0]
    D = E // heads
    L = len(params["layers"])
    FE = params["layers"][0]["w1"].shape[0]

    f = _fuse_params(params, heads=heads, weight_dtype=weight_dtype)
    pos = params["pos_table"][:S]                          # (S, E) glue slice in plain JAX

    Bn = _pick_batch_block(N)
    NB = N // Bn
    wbytes = jnp.dtype(weight_dtype).itemsize

    # ---- Stage 1: embedding (keeps the (V, E) table out of the layer loop) --
    emb = pl.pallas_call(
        embed_kernel,
        out_shape=jax.ShapeDtypeStruct((N, S, E), jnp.float32),
        grid_spec=pltpu.PrefetchScalarGridSpec(
            num_scalar_prefetch=0,
            grid=(NB,),
            in_specs=[
                pl.BlockSpec((Bn, S, V), lambda n: (n, 0, 0)),   # x
                pl.BlockSpec((V, E), lambda n: (0, 0)),          # w_we_t
                pl.BlockSpec((1, E), lambda n: (0, 0)),          # b_we
                pl.BlockSpec((S, E), lambda n: (0, 0)),          # pos
            ],
            out_specs=pl.BlockSpec((Bn, S, E), lambda n: (n, 0, 0)),
        ),
        compiler_params=pltpu.CompilerParams(
            dimension_semantics=("parallel",),
        ),
    )(x, f["w_we_t"], f["b_we"], pos)

    # ---- Stage 2: fused transformer layers ----------------------------------
    layer_map = lambda n, l: (l, 0, 0)
    batch_map = lambda n, l: (n, 0, 0)

    block_bytes = [
        Bn * S * E * 4,                                    # emb
        E * E * wbytes, E * E * wbytes, E * E * wbytes, E * E * wbytes,
        8 * E * 4,                                         # packed vecs
        E * FE * wbytes, FE * 4, FE * E * wbytes,          # w1, b1, w2
        Bn * S * E * 4,                                    # output
    ]

    kern = functools.partial(encoder_layers_kernel, heads=heads, head_dim=D, eps=eps)
    return pl.pallas_call(
        kern,
        out_shape=jax.ShapeDtypeStruct((N, S, E), jnp.float32),
        grid_spec=pltpu.PrefetchScalarGridSpec(
            num_scalar_prefetch=0,
            grid=(NB, L),                                  # (batch block, layer)
            in_specs=[
                pl.BlockSpec((Bn, S, E), batch_map),       # embedded activation
                pl.BlockSpec((1, E, E), layer_map),        # wq (block-diag, scaled)
                pl.BlockSpec((1, E, E), layer_map),        # wk
                pl.BlockSpec((1, E, E), layer_map),        # wv
                pl.BlockSpec((1, E, E), layer_map),        # wo
                pl.BlockSpec((1, 8, E), layer_map),        # packed ln/bias vectors
                pl.BlockSpec((1, E, FE), layer_map),       # w1
                pl.BlockSpec((1, 1, FE), layer_map),       # b1
                pl.BlockSpec((1, FE, E), layer_map),       # w2
            ],
            out_specs=pl.BlockSpec((Bn, S, E), batch_map),
        ),
        compiler_params=pltpu.CompilerParams(
            dimension_semantics=("parallel", "arbitrary"),
            vmem_limit_bytes=_vmem_budget(block_bytes),
        ),
    )(emb, f["wq"], f["wk"], f["wv"], f["wo"], f["vecs"], f["w1"], f["b1"], f["w2"])


# -----------------------------------------------------------------------------
# Deterministic parameter init + pure-JAX reference (PyTorch layout / semantics)
# -----------------------------------------------------------------------------
def init_params(key, *, src_vocab_size, embed_size, num_layers, heads,
                forward_expansion, max_length):
    D = embed_size // heads
    FE = forward_expansion * embed_size
    keys = jax.random.split(key, 4 + num_layers)
    params = {
        "w_we": 0.05 * jax.random.normal(keys[0], (embed_size, src_vocab_size), jnp.float32),
        "b_we": 0.05 * jax.random.normal(keys[1], (1, embed_size), jnp.float32),
        "pos_table": 0.05 * jax.random.normal(keys[2], (max_length, embed_size), jnp.float32),
        "layers": [],
    }
    for li in range(num_layers):
        k = jax.random.split(keys[4 + li], 8)
        params["layers"].append({
            "wq": 0.1 * jax.random.normal(k[0], (D, D), jnp.float32),
            "wk": 0.1 * jax.random.normal(k[1], (D, D), jnp.float32),
            "wv": 0.1 * jax.random.normal(k[2], (D, D), jnp.float32),
            "wo": 0.1 * jax.random.normal(k[3], (embed_size, embed_size), jnp.float32),
            "ln1_g": jnp.ones((1, embed_size), jnp.float32),
            "ln1_b": jnp.zeros((1, embed_size), jnp.float32),
            "w1": 0.1 * jax.random.normal(k[4], (FE, embed_size), jnp.float32),
            "b1": 0.05 * jax.random.normal(k[5], (1, FE), jnp.float32),
            "w2": 0.1 * jax.random.normal(k[6], (embed_size, FE), jnp.float32),
            "b2": 0.05 * jax.random.normal(k[7], (1, embed_size), jnp.float32),
            "ln2_g": jnp.ones((1, embed_size), jnp.float32),
            "ln2_b": jnp.zeros((1, embed_size), jnp.float32),
        })
    return params


def encoder_reference(x, params, *, heads, head_dim, embed_size, eps=1e-5):
    """Plain-JAX reference mirroring the PyTorch forward exactly."""
    N, S, _ = x.shape
    out = x @ params["w_we"].T + params["b_we"] + params["pos_table"][:S][None]

    def ln(v, g, b):
        mu = jnp.mean(v, axis=-1, keepdims=True)
        var = jnp.mean((v - mu) ** 2, axis=-1, keepdims=True)
        return (v - mu) / jnp.sqrt(var + eps) * g + b

    for lp in params["layers"]:
        xh = out.reshape(N, S, heads, head_dim)
        q = xh @ lp["wq"].T
        k = xh @ lp["wk"].T
        v = xh @ lp["wv"].T
        energy = jnp.einsum("nqhd,nkhd->nhqk", q, k)
        attn = jax.nn.softmax(energy / (embed_size ** 0.5), axis=3)
        o = jnp.einsum("nhql,nlhd->nqhd", attn, v).reshape(N, S, embed_size)
        o = o @ lp["wo"].T
        h1 = ln(o + out, lp["ln1_g"], lp["ln1_b"])
        ff = jnp.maximum(h1 @ lp["w1"].T + lp["b1"], 0.0) @ lp["w2"].T + lp["b2"]
        out = ln(ff + h1, lp["ln2_g"], lp["ln2_b"])
    return out


# -----------------------------------------------------------------------------
if __name__ == "__main__":
    # Small config consistent with the module's __init__ (N=4 so batch blocking
    # with Bn=2 and two megacore-parallel batch blocks is actually exercised).
    N, S = 4, 8
    src_vocab_size = 16
    embed_size = 32
    heads = 4
    head_dim = embed_size // heads
    num_layers = 2
    forward_expansion = 4
    max_length = 16

    key = jax.random.PRNGKey(0)
    kx, kp = jax.random.split(key)
    x = jax.random.normal(kx, (N, S, src_vocab_size), jnp.float32)
    params = init_params(
        kp,
        src_vocab_size=src_vocab_size, embed_size=embed_size,
        num_layers=num_layers, heads=heads,
        forward_expansion=forward_expansion, max_length=max_length,
    )

    ref = encoder_reference(x, params, heads=heads, head_dim=head_dim,
                            embed_size=embed_size)

    # f32 weight path: tight correctness check (exact softmax reciprocal).
    out32 = jax.block_until_ready(
        encoder_forward(x, params, heads=heads, weight_dtype=jnp.float32))
    assert out32.shape == (N, S, embed_size)
    assert jnp.allclose(out32, ref, rtol=2e-3, atol=2e-3), "f32 mismatch vs reference"

    # bf16 weight-streaming path (production config from the perf review):
    # halves weight HBM bytes / VMEM double-buffer footprint; f32 accumulation.
    out16 = jax.block_until_ready(
        encoder_forward(x, params, heads=heads, weight_dtype=jnp.bfloat16))
    assert out16.shape == (N, S, embed_size)
    assert jnp.allclose(out16, ref, rtol=5e-2, atol=5e-2), "bf16 mismatch vs reference"

    print("KERNEL_OK")
</pallas_src>

<mosaic_0001>
module attributes {stable_mosaic.version = 11 : i64} {
  func.func @embed_kernel(%arg0: i32, %arg1: memref<2x8x16xf32, #tpu.memory_space<vmem>>, %arg2: memref<16x32xf32, #tpu.memory_space<vmem>>, %arg3: memref<1x32xf32, #tpu.memory_space<vmem>>, %arg4: memref<8x32xf32, #tpu.memory_space<vmem>>, %arg5: memref<2x8x32xf32, #tpu.memory_space<vmem>>) attributes {dimension_semantics = [#tpu.dimension_semantics<parallel>], iteration_bounds = array<i64: 2>, scalar_prefetch = 0 : i64, scratch_operands = 0 : i64, tpu.core_type = #tpu.core_type<tc>, window_params = [{transform_indices = @transform_0, window_bounds = array<i64: 2, 8, 16>}, {pipeline_mode = #tpu.pipeline_mode<synchronous>, transform_indices = @transform_1, window_bounds = array<i64: 16, 32>}, {pipeline_mode = #tpu.pipeline_mode<synchronous>, transform_indices = @transform_2, window_bounds = array<i64: 1, 32>}, {pipeline_mode = #tpu.pipeline_mode<synchronous>, transform_indices = @transform_3, window_bounds = array<i64: 8, 32>}, {transform_indices = @transform_4, window_bounds = array<i64: 2, 8, 32>}]} {
    %c0 = arith.constant 0 : index
    %c0_0 = arith.constant 0 : index
    %c0_1 = arith.constant 0 : index
    %0 = vector.load %arg1[%c0, %c0_0, %c0_1] : memref<2x8x16xf32, #tpu.memory_space<vmem>>, vector<2x8x16xf32>
    %1 = vector.shape_cast %0 : vector<2x8x16xf32> to vector<16x16xf32>
    %c0_2 = arith.constant 0 : index
    %c0_3 = arith.constant 0 : index
    %2 = vector.load %arg2[%c0_2, %c0_3] : memref<16x32xf32, #tpu.memory_space<vmem>>, vector<16x32xf32>
    %cst = arith.constant dense<0.000000e+00> : vector<16x32xf32>
    %3 = tpu.matmul %1, %2, %cst {dimension_numbers = #tpu.dot_dimension_numbers<[1], [0], [0], [1], [0, 0, 1, 1], [], []>} : vector<16x16xf32>, vector<16x32xf32>, vector<16x32xf32> -> vector<16x32xf32>
    %4 = vector.shape_cast %3 : vector<16x32xf32> to vector<2x8x32xf32>
    %c0_4 = arith.constant 0 : index
    %c0_5 = arith.constant 0 : index
    %5 = vector.load %arg3[%c0_4, %c0_5] : memref<1x32xf32, #tpu.memory_space<vmem>>, vector<1x32xf32>
    %6 = vector.shape_cast %5 : vector<1x32xf32> to vector<1x1x32xf32>
    %7 = vector.broadcast %6 : vector<1x1x32xf32> to vector<2x8x32xf32>
    %8 = arith.addf %4, %7 : vector<2x8x32xf32>
    %c0_6 = arith.constant 0 : index
    %c0_7 = arith.constant 0 : index
    %9 = vector.load %arg4[%c0_6, %c0_7] : memref<8x32xf32, #tpu.memory_space<vmem>>, vector<8x32xf32>
    %10 = vector.shape_cast %9 : vector<8x32xf32> to vector<1x8x32xf32>
    %11 = vector.broadcast %10 : vector<1x8x32xf32> to vector<2x8x32xf32>
    %12 = arith.addf %8, %11 : vector<2x8x32xf32>
    %c0_8 = arith.constant 0 : index
    %c0_9 = arith.constant 0 : index
    %c0_10 = arith.constant 0 : index
    %13 = vector.load %arg5[%c0_8, %c0_9, %c0_10] : memref<2x8x32xf32, #tpu.memory_space<vmem>>, vector<2x8x32xf32>
    tpu.vector_store %arg5[%c0_8, %c0_9, %c0_10], %12 {strides = array<i32>} : memref<2x8x32xf32, #tpu.memory_space<vmem>>, vector<2x8x32xf32>,
    return
  }
  func.func @transform_0(%arg0: i32) -> (i32, i32, i32) {
    %c0_i32 = arith.constant 0 : i32
    %c0_i32_0 = arith.constant 0 : i32
    %c0_i32_1 = arith.constant 0 : i32
    return %arg0, %c0_i32, %c0_i32_0 : i32, i32, i32
  }
  func.func @transform_1(%arg0: i32) -> (i32, i32) {
    %c0_i32 = arith.constant 0 : i32
    %c0_i32_0 = arith.constant 0 : i32
    %c0_i32_1 = arith.constant 0 : i32
    return %c0_i32, %c0_i32_0 : i32, i32
  }
  func.func @transform_2(%arg0: i32) -> (i32, i32) {
    %c0_i32 = arith.constant 0 : i32
    %c0_i32_0 = arith.constant 0 : i32
    %c0_i32_1 = arith.constant 0 : i32
    return %c0_i32, %c0_i32_0 : i32, i32
  }
  func.func @transform_3(%arg0: i32) -> (i32, i32) {
    %c0_i32 = arith.constant 0 : i32
    %c0_i32_0 = arith.constant 0 : i32
    %c0_i32_1 = arith.constant 0 : i32
    return %c0_i32, %c0_i32_0 : i32, i32
  }
  func.func @transform_4(%arg0: i32) -> (i32, i32, i32) {
    %c0_i32 = arith.constant 0 : i32
    %c0_i32_0 = arith.constant 0 : i32
    %c0_i32_1 = arith.constant 0 : i32
    return %arg0, %c0_i32, %c0_i32_0 : i32, i32, i32
  }
}

</mosaic_0001>

<llo_original>
// kernel: tpu_custom_call.1
$region0: #{tpu_custom_call.1}
  #allocation0 [shape = 'u32[]', space=smem, size = 0x4, offset = 0x4, fixed_abs, tag = 'smem constant byte address 0x4 - core index']
  #allocation1 [shape = 'u32[72,128]{1,0:T(1,128)}', space=vmem, size = 0x9000, scoped, tag = 'internal scratch']
  %s0 = inlined_call_operand.hbm [shape: f32[4,8,16], index: 0, kind: input, shape index: {}]
  %s1 = inlined_call_operand.hbm [shape: f32[16,32], index: 1, kind: input, shape index: {}]
  %s2 = inlined_call_operand.vmem [shape: f32[1,32], index: 2, kind: input, shape index: {}]
  %s3 = inlined_call_operand.hbm [shape: f32[8,32], index: 3, kind: input, shape index: {}]
  %s4 = inlined_call_operand.hbm [shape: f32[4,8,32], index: 4, kind: output, shape index: {}]
  %s5 = sld [smem:[#allocation0]]
  $region61: #{tpu_custom_call.1} parent=0
    _
  %s7 = ssub.s32 1, %s5
  %s8 = scalar_select 0, %s7, %s5
  $region1: #{tpu_custom_call.1} parent=0
    #allocation2 [shape = 'u8[16384]{0}', space=vmem, size = 0x4000, scoped, tag = 'input window, operand 0']
    #allocation3 [shape = 's32[2]{0}', space=sflag, size = 0x8, scoped, tag = 'scoped memory for tpu_custom_call.1']
    #allocation4 [shape = 's32[2]{0}', space=sflag, size = 0x8, scoped, tag = 'scoped memory for tpu_custom_call.1']
    #allocation5 [shape = 'u8[8192]{0}', space=vmem, size = 0x2000, scoped, tag = 'input window, operand 1, single buffered']
    #allocation6 [shape = 's32[1]{0}', space=sflag, size = 0x4, scoped, tag = 'scoped memory for tpu_custom_call.1']
    #allocation7 [shape = 'u8[4096]{0}', space=vmem, size = 0x1000, scoped, tag = 'input window, operand 3, single buffered']
    #allocation8 [shape = 'u8[16384]{0}', space=vmem, size = 0x4000, scoped, tag = 'output window, operand 0']
    %9 = vsyncpa [#allocation3], 0
    %s10 = scalar_lea.sflag [#allocation3], 1
    %11 = vsyncpa %s10, 0
    %12 = vsyncpa [#allocation6], 0
    %13 = vsyncpa [#allocation4], 0
    %s14 = scalar_lea.sflag [#allocation4], 1
    %15 = vsyncpa %s14, 0
    loop: start=0, step=1, limit=4
    $region2: #{tpu_custom_call.1} parent=1 // loop_pre_header
      _
    $region3: #{tpu_custom_call.1} parent=1 // loop_header
      %s17 = sphi 0, %s21
      %p18 = scmp.ge.s32.totalorder %s17, 4
      %s27 = sphi 0, %s29
      %s30 = sphi 0, %s27
      %s31 = sphi 0, %s30
      %s47 = sphi 0, %s31
      %s51 = sphi 0, %s51
      %s53 = sphi 0, %s51
      %s54 = sphi 0, %s53
      %s68 = sphi 0, %s54
      %s72 = sphi 0, %s72
      %s74 = sphi 0, %s72
      %s75 = sphi 0, %s74
      %s89 = sphi 0, %s75
      %s93 = sphi 0, %s93
      %s95 = sphi 0, %s93
      %s96 = sphi 0, %s95
      %s110 = sphi 0, %s96
      %s116 = sphi 0, %s118
      %s119 = sphi 0, %s116
      %s120 = sphi 0, %s119
      %s136 = sphi 0, %s120
    $region4: #{tpu_custom_call.1} parent=1 // loop_header_branch
      %20 = sbr.rel (%p18) target = $region8
    $region5: #{tpu_custom_call.1} parent=1 // loop_body
      %s22 = ssub.s32 %s17, 1
      %s23 = ssub.s32 %s17, 2
      %s24 = sadd.s32 %s17, 1
      %s25 = ssub.s32 %s17, %s24
      %p26 = scmp.eq.s32.totalorder %s25, 0
      %s28 = sadd.s32 %s27, 1
      %s29 = scalar_select %p26, %s27, %s28
      %p32 = pneg %p26
      %p33 = scmp.eq.s32.totalorder %s17, 1
      %p34 = por %p32, %p33
      %p35 = scmp.ne.s32.totalorder %s27, %s30
      %p36 = scmp.eq.s32.totalorder %s17, 0
      %p37 = por %p35, %p36
      %p38 = scmp.ne.s32.totalorder %s27, %s30
      %p39 = scmp.eq.s32.totalorder %s22, 1
      %p40 = por %p38, %p39
      %p41 = scmp.ne.s32.totalorder %s30, %s31
      %p42 = scmp.eq.s32.totalorder %s22, 0
      %p43 = por %p41, %p42
      %p44 = scmp.ne.s32.totalorder %s30, %s31
      %p45 = scmp.eq.s32.totalorder %s23, 1
      %p46 = por %p44, %p45
      %p48 = scmp.ne.s32.totalorder %s31, %s47
      %p49 = scmp.eq.s32.totalorder %s23, 0
      %p50 = por %p48, %p49
      %s52 = sadd.s32 %s51, 1
      %p55 = scmp.eq.s32.totalorder %s17, 1
      %p56 = scmp.ne.s32.totalorder %s51, %s53
      %p57 = scmp.eq.s32.totalorder %s17, 0
      %p58 = por %p56, %p57
      %p59 = scmp.ne.s32.totalorder %s51, %s53
      %p60 = scmp.eq.s32.totalorder %s22, 1
      %p61 = por %p59, %p60
      %p62 = scmp.ne.s32.totalorder %s53, %s54
      %p63 = scmp.eq.s32.totalorder %s22, 0
      %p64 = por %p62, %p63
      %p65 = scmp.ne.s32.totalorder %s53, %s54
      %p66 = scmp.eq.s32.totalorder %s23, 1
      %p67 = por %p65, %p66
      %p69 = scmp.ne.s32.totalorder %s54, %s68
      %p70 = scmp.eq.s32.totalorder %s23, 0
      %p71 = por %p69, %p70
      %s73 = sadd.s32 %s72, 1
      %p76 = scmp.eq.s32.totalorder %s17, 1
      %p77 = scmp.ne.s32.totalorder %s72, %s74
      %p78 = scmp.eq.s32.totalorder %s17, 0
      %p79 = por %p77, %p78
      %p80 = scmp.ne.s32.totalorder %s72, %s74
      %p81 = scmp.eq.s32.totalorder %s22, 1
      %p82 = por %p80, %p81
      %p83 = scmp.ne.s32.totalorder %s74, %s75
      %p84 = scmp.eq.s32.totalorder %s22, 0
      %p85 = por %p83, %p84
      %p86 = scmp.ne.s32.totalorder %s74, %s75
      %p87 = scmp.eq.s32.totalorder %s23, 1
      %p88 = por %p86, %p87
      %p90 = scmp.ne.s32.totalorder %s75, %s89
      %p91 = scmp.eq.s32.totalorder %s23, 0
      %p92 = por %p90, %p91
      %s94 = sadd.s32 %s93, 1
      %p97 = scmp.eq.s32.totalorder %s17, 1
      %p98 = scmp.ne.s32.totalorder %s93, %s95
      %p99 = scmp.eq.s32.totalorder %s17, 0
      %p100 = por %p98, %p99
      %p101 = scmp.ne.s32.totalorder %s93, %s95
      %p102 = scmp.eq.s32.totalorder %s22, 1
      %p103 = por %p101, %p102
      %p104 = scmp.ne.s32.totalorder %s95, %s96
      %p105 = scmp.eq.s32.totalorder %s22, 0
      %p106 = por %p104, %p105
      %p107 = scmp.ne.s32.totalorder %s95, %s96
      %p108 = scmp.eq.s32.totalorder %s23, 1
      %p109 = por %p107, %p108
      %p111 = scmp.ne.s32.totalorder %s96, %s110
      %p112 = scmp.eq.s32.totalorder %s23, 0
      %p113 = por %p111, %p112
      %s114 = ssub.s32 %s17, %s24
      %p115 = scmp.eq.s32.totalorder %s114, 0
      %s117 = sadd.s32 %s116, 1
      %s118 = scalar_select %p115, %s116, %s117
      %p121 = pneg %p115
      %p122 = scmp.eq.s32.totalorder %s17, 1
      %p123 = por %p121, %p122
      %p124 = scmp.ne.s32.totalorder %s116, %s119
      %p125 = scmp.eq.s32.totalorder %s17, 0
      %p126 = por %p124, %p125
      %p127 = scmp.ne.s32.totalorder %s116, %s119
      %p128 = scmp.eq.s32.totalorder %s22, 1
      %p129 = por %p127, %p128
      %p130 = scmp.ne.s32.totalorder %s119, %s120
      %p131 = scmp.eq.s32.totalorder %s22, 0
      %p132 = por %p130, %p131
      %p133 = scmp.ne.s32.totalorder %s119, %s120
      %p134 = scmp.eq.s32.totalorder %s23, 1
      %p135 = por %p133, %p134
      %p137 = scmp.ne.s32.totalorder %s120, %s136
      %p138 = scmp.eq.s32.totalorder %s23, 0
      %p139 = por %p137, %p138
      %p140 = scmp.le.s32.totalorder 1, %s17
      %p141 = scmp.lt.s32.totalorder %s17, 3
      %p142 = pnand %p140, %p141
      %p143 = pneg %p142
      // Predicated region
      $region9: #{tpu_custom_call.1} parent=5 // pred_check
        _
      $region10: #{tpu_custom_call.1} parent=5 // pred_check_branch
        %145 = sbr.rel (%p142) target = $region12
      $region11: #{tpu_custom_call.1} parent=5 // pred_region
        %s146 = ssub.s32 %s17, 1
        // Predicated region
        $region13: #{tpu_custom_call.1} parent=11 // pred_check
          %p147 = pneg %p64
        $region14: #{tpu_custom_call.1} parent=11 // pred_check_branch
          %149 = sbr.rel (%p147) target = $region16
        $region15: #{tpu_custom_call.1} parent=11 // pred_region
          %151 = vsyncadd [#allocation6], 0
          %s152 = sshll.u32 %s1, 4
          %s153 = int_to_ptr.hbm [resolvable:$true] %s152
          %s154 = sshll.u32 [#allocation5], 4
          %s155 = int_to_ptr.vmem [resolvable:$true] %s154
          %160 = dma.hbm_to_vmem [thread:$0]  %s153, 256, %s155, [#allocation6], 128, 128, 8
        $region16: #{tpu_custom_call.1} parent=11 // pred_fallthru
          _
        // Predicated region
        $region17: #{tpu_custom_call.1} parent=11 // pred_check
          %p161 = pneg %p85
        $region18: #{tpu_custom_call.1} parent=11 // pred_check_branch
          %163 = sbr.rel (%p161) target = $region20
        $region19: #{tpu_custom_call.1} parent=11 // pred_region
          _
        $region20: #{tpu_custom_call.1} parent=11 // pred_fallthru
          _
        // Predicated region
        $region21: #{tpu_custom_call.1} parent=11 // pred_check
          %p164 = pneg %p106
        $region22: #{tpu_custom_call.1} parent=11 // pred_check_branch
          %166 = sbr.rel (%p164) target = $region24
        $region23: #{tpu_custom_call.1} parent=11 // pred_region
          %168 = vsyncadd [#allocation6], 0
          %s170 = sshll.u32 %s3, 4
          %s171 = int_to_ptr.hbm [resolvable:$true] %s170
          %s172 = sshll.u32 [#allocation7], 4
          %s173 = int_to_ptr.vmem [resolvable:$true] %s172
          %175 = dma.hbm_to_vmem [thread:$0]  %s171, 128, %s173, [#allocation6]
        $region24: #{tpu_custom_call.1} parent=11 // pred_fallthru
          _
      $region12: #{tpu_custom_call.1} parent=5 // pred_fallthru
        _
      %p176 = scmp.lt.s32.totalorder %s17, 2
      // Predicated region
      $region25: #{tpu_custom_call.1} parent=5 // pred_check
        %p177 = pneg %p176
      $region26: #{tpu_custom_call.1} parent=5 // pred_check_branch
        %179 = sbr.rel (%p177) target = $region28
      $region27: #{tpu_custom_call.1} parent=5 // pred_region
        // Predicated region
        $region29: #{tpu_custom_call.1} parent=27 // pred_check
          %p180 = pneg %p37
        $region30: #{tpu_custom_call.1} parent=27 // pred_check_branch
          %182 = sbr.rel (%p180) target = $region32
        $region31: #{tpu_custom_call.1} parent=27 // pred_region
          %s183 = sand.u32 %s27, 1
          %s184 = scalar_lea.sflag [#allocation3], %s183
          %s185 = sand.u32 %s27, 1
          %s186 = smul.addr %s185, 16
          %s187 = scalar_lea.vmem [#allocation2], %s186
          %s188 = smul.u32 2, %s17
          %190 = vsyncadd %s184, 0
          %s191 = smul.addr %s188, 8
          %s192 = scalar_lea.hbm %s0, %s191
          %s193 = sshll.u32 %s192, 4
          %s194 = int_to_ptr.hbm [resolvable:$true] %s193
          %s195 = sshll.u32 %s187, 4
          %s196 = int_to_ptr.vmem [resolvable:$true] %s195
          %201 = dma.hbm_to_vmem [thread:$0]  %s194, 256, %s196, %s184, 128, 128, 8
        $region32: #{tpu_custom_call.1} parent=27 // pred_fallthru
          _
      $region28: #{tpu_custom_call.1} parent=5 // pred_fallthru
        _
      %p202 = scmp.le.s32.totalorder 1, %s17
      %p203 = scmp.lt.s32.totalorder %s17, 3
      %p204 = pnand %p202, %p203
      %p205 = pneg %p204
      // Predicated region
      $region33: #{tpu_custom_call.1} parent=5 // pred_check
        _
      $region34: #{tpu_custom_call.1} parent=5 // pred_check_branch
        %207 = sbr.rel (%p204) target = $region36
      $region35: #{tpu_custom_call.1} parent=5 // pred_region
        %s208 = ssub.s32 %s17, 1
        %s209 = sand.u32 %s30, 1
        %s210 = scalar_lea.sflag [#allocation3], %s209
        %s211 = sand.u32 %s30, 1
        %s212 = smul.addr %s211, 16
        %s213 = scalar_lea.vmem [#allocation2], %s212
        // Predicated region
        $region37: #{tpu_custom_call.1} parent=35 // pred_check
          %p214 = pneg %p43
        $region38: #{tpu_custom_call.1} parent=35 // pred_check_branch
          %216 = sbr.rel (%p214) target = $region40
        $region39: #{tpu_custom_call.1} parent=35 // pred_region
          %218 = dma.done %s210, 256
        $region40: #{tpu_custom_call.1} parent=35 // pred_fallthru
          _
        // Predicated region
        $region41: #{tpu_custom_call.1} parent=35 // pred_check
          %p219 = pneg %p64
        $region42: #{tpu_custom_call.1} parent=35 // pred_check_branch
          %221 = sbr.rel (%p219) target = $region44
        $region43: #{tpu_custom_call.1} parent=35 // pred_region
          %223 = dma.done [#allocation6], 256
        $region44: #{tpu_custom_call.1} parent=35 // pred_fallthru
          _
        // Predicated region
        $region45: #{tpu_custom_call.1} parent=35 // pred_check
          %p224 = pneg %p106
        $region46: #{tpu_custom_call.1} parent=35 // pred_check_branch
          %226 = sbr.rel (%p224) target = $region48
        $region47: #{tpu_custom_call.1} parent=35 // pred_region
          %228 = dma.done [#allocation6], 128
        $region48: #{tpu_custom_call.1} parent=35 // pred_fallthru
          _
        %s229 = sand.u32 %s30, 1
        %s230 = scalar_lea.sflag [#allocation3], %s229
        %s231 = sand.u32 %s30, 1
        %s232 = smul.addr %s231, 16
        %s233 = scalar_lea.vmem [#allocation2], %s232
        %p234 = pneg %p43
        %p235 = pneg %p40
        %p236 = pneg %p64
        %p237 = pneg %p61
        %p238 = pneg %p85
        %p239 = pneg %p82
        %p240 = pneg %p106
        %p241 = pneg %p103
        %p242 = pneg %p132
        %p243 = pneg %p129
        %s244 = sand.u32 %s119, 1
        %s245 = scalar_lea.sflag [#allocation4], %s244
        %s246 = sand.u32 %s119, 1
        %s247 = smul.addr %s246, 16
        %s248 = scalar_lea.vmem [#allocation8], %s247
        %s249 = smul.u32 2, %s22
        %s250 = smul.u32 2, %s22
        %v251 = vld [vmem:[%s213] sm:$0xff]
        %v252 = vld [vmem:[%s213 + $0x8] sm:$0xff]
        %v253 = vld [vmem:[#allocation5] sm:$0xff]
        %v254 = vld [vmem:[#allocation5 + $0x8] sm:$0xff]
        %vm255 = vcmask 130048
        %v257 = vsel %vm255, %v251, 0
        %v260 = vsel %vm255, %v252, 0
        %262 = vmatpush.msra.mxu0 0.0
        %263 = vmatpush.msra.mxu0 0.0
        %264 = vmatpush.msra.mxu0 0.0
        %265 = vmatpush.msra.mxu0 0.0
        %266 = vmatpush.msra.mxu0 0.0
        %267 = vmatpush.msra.mxu0 0.0
        %268 = vmatpush.msra.mxu0 0.0
        %269 = vmatpush.msra.mxu0 0.0
        %270 = vmatpush.msra.mxu0 0.0
        %271 = vmatpush.msra.mxu0 0.0
        %272 = vmatpush.msra.mxu0 0.0
        %273 = vmatpush.msra.mxu0 0.0
        %274 = vmatpush.msra.mxu0 0.0
        %275 = vmatpush.msra.mxu0 0.0
        %276 = vmatpush.msra.mxu0 %v254
        %277 = vmatpush.msra.mxu0 %v253
        %278 = vmatmul.f32.gmra.mxu0 %v257
        %v279 = vpop.f32.mrf.mxu0
        %v280 = vadd.f32 0.0, %v279
        %281 = vmatmul.f32.gmra.mxu0 %v260
        %v282 = vpop.f32.mrf.mxu0
        %v283 = vadd.f32 0.0, %v282
        %284 = vdwg.mxu0
        %v285 = vld [vmem:[%s2] sm:$0x1]
        %v287 = vperm.slane %v285, 0
        %v289 = vadd.f32 %v280, %v287
        %v290 = vadd.f32 %v283, %v287
        %v291 = vld [vmem:[#allocation7] sm:$0xff]
        %v292 = vadd.f32 %v289, %v291
        %v293 = vadd.f32 %v290, %v291
        %vm294 = vcmask 261120
        %295 = vst.msk [vmem:[%s248] sm:$0xff] %vm294, %v292
        %296 = vst.msk [vmem:[%s248 + $0x8] sm:$0xff] %vm294, %v293
        %s297 = sand.u32 %s119, 1
        %s298 = scalar_lea.sflag [#allocation4], %s297
        %s299 = sand.u32 %s119, 1
        %s300 = smul.addr %s299, 16
        %s301 = scalar_lea.vmem [#allocation8], %s300
        // Predicated region
        $region49: #{tpu_custom_call.1} parent=35 // pred_check
          %p302 = pneg %p129
        $region50: #{tpu_custom_call.1} parent=35 // pred_check_branch
          %304 = sbr.rel (%p302) target = $region52
        $region51: #{tpu_custom_call.1} parent=35 // pred_region
          %s305 = smul.u32 2, %s22
          %307 = vsyncadd %s298, 0
          %s308 = smul.addr %s305, 8
          %s309 = scalar_lea.hbm %s4, %s308
          %s310 = sshll.u32 %s301, 4
          %s311 = int_to_ptr.vmem [resolvable:$true] %s310
          %s312 = sshll.u32 %s309, 4
          %s313 = int_to_ptr.hbm [resolvable:$true] %s312
          %318 = dma.vmem_to_hbm [thread:$0]  %s311, 256, %s313, %s298, 128, 128, 8
        $region52: #{tpu_custom_call.1} parent=35 // pred_fallthru
          _
      $region36: #{tpu_custom_call.1} parent=5 // pred_fallthru
        _
      %p319 = scmp.le.s32.totalorder 2, %s17
      // Predicated region
      $region53: #{tpu_custom_call.1} parent=5 // pred_check
        %p320 = pneg %p319
      $region54: #{tpu_custom_call.1} parent=5 // pred_check_branch
        %322 = sbr.rel (%p320) target = $region56
      $region55: #{tpu_custom_call.1} parent=5 // pred_region
        %s323 = ssub.s32 %s17, 2
        // Predicated region
        $region57: #{tpu_custom_call.1} parent=55 // pred_check
          %p324 = pneg %p135
        $region58: #{tpu_custom_call.1} parent=55 // pred_check_branch
          %326 = sbr.rel (%p324) target = $region60
        $region59: #{tpu_custom_call.1} parent=55 // pred_region
          %s327 = sand.u32 %s120, 1
          %s328 = scalar_lea.sflag [#allocation4], %s327
          %s329 = sand.u32 %s120, 1
          %s330 = smul.addr %s329, 16
          %s331 = scalar_lea.vmem [#allocation8], %s330
          %333 = dma.done %s328, 256
        $region60: #{tpu_custom_call.1} parent=55 // pred_fallthru
          _
      $region56: #{tpu_custom_call.1} parent=5 // pred_fallthru
        _
    $region6: #{tpu_custom_call.1} parent=1 // loop_footer
      %s21 = sadd.s32 1, %s17
    $region7: #{tpu_custom_call.1} parent=1 // loop_footer_branch
      %16 = sbr.rel target = $region3
    $region8: #{tpu_custom_call.1} parent=1 // loop_exit
      _
    %334 = vsyncpa [#allocation3], 1
    %s335 = scalar_lea.sflag [#allocation3], 1
    %336 = vsyncpa %s335, 1
    %337 = vsyncpa [#allocation6], 1
    %338 = vsyncpa [#allocation4], 1
    %s339 = scalar_lea.sflag [#allocation4], 1
    %340 = vsyncpa %s339, 1

</llo_original>
